<compile_context>
chip_gen: v5e
topology: v5e:2x2
jax: 0.10.0
libtpu: 0.0.40
codegen_flags: <defaults>
</compile_context>

<pallas_src>
import jax
import jax.numpy as jnp
from jax.experimental import pallas as pl
from jax.experimental.pallas import tpu as pltpu

LANE = 128


def _round_up(x, m):
    return (x + m - 1) // m * m


# ---------------------------------------------------------------------------
# Pass 1: bond projection + multi-hot MXU gather + partial BN statistics
# ---------------------------------------------------------------------------
def _proj_gather_stats_kernel(src_ref, dst_ref, gid_ref,   # (tile, 1) int32 indices
                              bond_ref, wb_ref, hu_ref,    # bf16 MXU operands
                              s_ref, psum_ref, pssq_ref):  # outputs
    f32 = jnp.float32
    tile = bond_ref.shape[0]
    n_tab = hu_ref.shape[0]

    # Bond projection for this row tile (MXU, bf16 inputs, f32 accumulation).
    acc = jnp.dot(bond_ref[...], wb_ref[...], preferred_element_type=f32)

    # Vectorized neighbour gather as a multi-hot MXU matmul:
    #   multi[r, t] = [t == src[r]] + [t == dst[r]] + [t == na_p + graph(src[r])]
    # One dot against the resident (h | u | zeros) table replaces the per-row
    # dynamic-sublane load / read-modify-write loop of the previous version.
    col = jax.lax.broadcasted_iota(jnp.int32, (tile, n_tab), 1)
    multi = ((col == src_ref[...]).astype(f32)        # f32 VPU math (v5e-safe)
             + (col == dst_ref[...]).astype(f32)
             + (col == gid_ref[...]).astype(f32))
    acc = acc + jnp.dot(multi.astype(hu_ref.dtype), hu_ref[...],
                        preferred_element_type=f32)

    # Single dense store of the pre-BN tile (padded rows are exactly zero).
    s_ref[...] = acc.astype(s_ref.dtype)

    # Per-tile partial BatchNorm statistics, computed from the f32 accumulator
    # (not re-read from s_ref).  Written as (8, cout) sublane-broadcast tiles so
    # the output block stays (8, 128)-aligned and the grid stays fully parallel.
    psum = jnp.sum(acc, axis=0, keepdims=True)          # (1, cout_p)
    pssq = jnp.sum(acc * acc, axis=0, keepdims=True)    # (1, cout_p)
    psum_ref[...] = jnp.broadcast_to(psum, psum_ref.shape)
    pssq_ref[...] = jnp.broadcast_to(pssq, pssq_ref.shape)


# ---------------------------------------------------------------------------
# Pass 2: folded BatchNorm affine + ReLU  (scale/shift precomputed in XLA)
# ---------------------------------------------------------------------------
def _bn_relu_kernel(s_ref, scale_ref, shift_ref, o_ref):
    x = s_ref[...].astype(jnp.float32)
    o_ref[...] = jnp.maximum(x * scale_ref[...] + shift_ref[...], jnp.float32(0.0))


# ---------------------------------------------------------------------------
# Full forward
# ---------------------------------------------------------------------------
def gatconv_global_bond_forward(feats, graph, params, residual=False,
                                compute_dtype=jnp.bfloat16, max_tile_rows=512):
    f32 = jnp.float32
    atom = feats["atom"]      # (Na, Cin)
    bond = feats["bond"]      # (Nb, Cin)
    glob = feats["global"]    # (Ng, Cin)

    na, cin = atom.shape
    nb = bond.shape[0]
    ng = glob.shape[0]
    cout = params["w_bond"].shape[1]

    if residual and cin != cout:   # module forces residual off when sizes differ
        residual = False

    cin_p = _round_up(cin, LANE)                       # full-K MXU
    cout_p = _round_up(cout, LANE)                     # lane-dense outputs
    na_p = _round_up(na, 8)
    ng_p = _round_up(ng, 8)
    tile = min(max_tile_rows, _round_up(nb, 8))        # 512-row tiles when possible
    nb_p = _round_up(nb, tile)
    n_tiles = nb_p // tile

    def pad2(x, rows, cols, dtype):
        return jnp.pad(x.astype(dtype),
                       ((0, rows - x.shape[0]), (0, cols - x.shape[1])))

    # ---- Hoisted atom/global projections (tiny XLA matmuls in f32), packed
    #      into one table with a trailing all-zero block used by padded edges.
    wa = pad2(params["w_atom"], cin_p, cout_p, f32)
    wg = pad2(params["w_global"], cin_p, cout_p, f32)
    h = pad2(atom, na_p, cin_p, f32) @ wa              # (na_p, cout_p)
    u = pad2(glob, ng_p, cin_p, f32) @ wg              # (ng_p, cout_p)
    zero_row = na_p + ng_p                             # first guaranteed-zero row
    hu = jnp.concatenate([h, u, jnp.zeros((8, cout_p), f32)], axis=0)
    hu = hu.astype(compute_dtype)                      # bf16 resident MXU operand
    n_tab = zero_row + 8

    # ---- bf16 MXU operands for the bond stream.
    bond_p = pad2(bond, nb_p, cin_p, compute_dtype)
    wb = pad2(params["w_bond"], cin_p, cout_p, compute_dtype)

    # ---- Edge index columns (int32 (nb_p, 1)); padded rows point at the
    #      all-zero table block so padded rows / stats are exactly zero.
    def idx_col(idx):
        idx = idx.astype(jnp.int32)
        pad = jnp.full((nb_p - idx.shape[0],), zero_row, jnp.int32)
        return jnp.concatenate([idx, pad])[:, None]

    src = idx_col(graph["bond_src"])
    dst = idx_col(graph["bond_dst"])
    gid = idx_col(na_p + graph["atom2graph"][graph["bond_src"]])

    # ---- explicit VMEM budgets (<= 48 MiB so the scheme still fits v7x).
    bpe = jnp.dtype(compute_dtype).itemsize
    resident_b = (cin_p + n_tab) * cout_p * bpe                        # wb + hu
    tile_b = tile * (cin_p + cout_p) * bpe + 3 * tile * LANE * 4 + 16 * cout_p * 4
    vmem_p1 = int(min(max(resident_b + 2 * tile_b + (4 << 20), 32 << 20), 48 << 20))
    vmem_p2 = int(min(max(2 * tile * cout_p * (bpe + 4) + (4 << 20), 32 << 20), 48 << 20))

    # ---- pass 1: projection + multi-hot gather + partial BN stats ----------
    # TODO(synk): for very large atom counts the O(tile * n_tab) multi-hot and
    # the VMEM-resident hu table should fall back to an HBM (pl.ANY) table with
    # per-tile DMA gathers; not needed at molecular-graph scales.
    s, psum_o, pssq_o = pl.pallas_call(
        _proj_gather_stats_kernel,
        out_shape=(jax.ShapeDtypeStruct((nb_p, cout_p), compute_dtype),
                   jax.ShapeDtypeStruct((8 * n_tiles, cout_p), f32),
                   jax.ShapeDtypeStruct((8 * n_tiles, cout_p), f32)),
        grid=(n_tiles,),
        in_specs=[
            pl.BlockSpec((tile, 1), lambda i: (i, 0)),          # src indices
            pl.BlockSpec((tile, 1), lambda i: (i, 0)),          # dst indices
            pl.BlockSpec((tile, 1), lambda i: (i, 0)),          # global indices
            pl.BlockSpec((tile, cin_p), lambda i: (i, 0)),      # bond tile
            pl.BlockSpec((cin_p, cout_p), lambda i: (0, 0)),    # w_bond (resident)
            pl.BlockSpec((n_tab, cout_p), lambda i: (0, 0)),    # hu table (resident)
        ],
        out_specs=[
            pl.BlockSpec((tile, cout_p), lambda i: (i, 0)),     # pre-BN sum (bf16)
            pl.BlockSpec((8, cout_p), lambda i: (i, 0)),        # partial sum
            pl.BlockSpec((8, cout_p), lambda i: (i, 0)),        # partial sum-sq
        ],
        compiler_params=pltpu.CompilerParams(
            dimension_semantics=("parallel",),
            vmem_limit_bytes=vmem_p1),
    )(src, dst, gid, bond_p, wb, hu)

    # ---- tiny XLA epilogue: reduce partials, fold BN into (scale, shift) -----
    # NOTE: E[x^2] - mean^2 in f32; fine for roughly zero-mean activations.
    total = jnp.sum(psum_o.reshape(n_tiles, 8, cout_p)[:, 0, :], axis=0)
    total_sq = jnp.sum(pssq_o.reshape(n_tiles, 8, cout_p)[:, 0, :], axis=0)
    mean = total / jnp.float32(nb)
    var = jnp.maximum(total_sq / jnp.float32(nb) - mean * mean, 0.0)
    rstd = jax.lax.rsqrt(var + jnp.float32(1e-5))
    gamma = jnp.pad(params["gamma"].reshape(-1).astype(f32), (0, cout_p - cout))
    beta = jnp.pad(params["beta"].reshape(-1).astype(f32), (0, cout_p - cout))
    scale = (gamma * rstd)[None, :]                     # (1, cout_p)
    shift = (beta - mean * gamma * rstd)[None, :]       # (1, cout_p)

    # ---- pass 2: relu(s * scale + shift), embarrassingly parallel -----------
    out_p = pl.pallas_call(
        _bn_relu_kernel,
        out_shape=jax.ShapeDtypeStruct((nb_p, cout_p), f32),
        grid=(n_tiles,),
        in_specs=[
            pl.BlockSpec((tile, cout_p), lambda i: (i, 0)),
            pl.BlockSpec((1, cout_p), lambda i: (0, 0)),
            pl.BlockSpec((1, cout_p), lambda i: (0, 0)),
        ],
        out_specs=pl.BlockSpec((tile, cout_p), lambda i: (i, 0)),
        compiler_params=pltpu.CompilerParams(
            dimension_semantics=("parallel",),
            vmem_limit_bytes=vmem_p2),
    )(s, scale, shift)

    out = out_p[:nb, :cout]
    if residual:  # default residual=False
        out = out + bond.astype(f32)
    return out


# ---------------------------------------------------------------------------
if __name__ == "__main__":
    key = jax.random.PRNGKey(0)
    in_size, out_size = 16, 32
    num_atoms, num_bonds, num_graphs = 12, 16, 2

    ks = jax.random.split(key, 8)
    feats = {
        "atom": jax.random.normal(ks[0], (num_atoms, in_size), jnp.float32),
        "bond": jax.random.normal(ks[1], (num_bonds, in_size), jnp.float32),
        "global": jax.random.normal(ks[2], (num_graphs, in_size), jnp.float32),
    }

    # Deterministic synthetic parameters (weights stored as [Cin, Cout], x @ W).
    scale = 1.0 / jnp.sqrt(jnp.float32(in_size))
    params = {
        "w_atom": jax.random.normal(ks[3], (in_size, out_size), jnp.float32) * scale,
        "w_bond": jax.random.normal(ks[4], (in_size, out_size), jnp.float32) * scale,
        "w_global": jax.random.normal(ks[5], (in_size, out_size), jnp.float32) * scale,
        "gamma": jnp.ones((1, out_size), jnp.float32),   # BatchNorm1d weight
        "beta": jnp.zeros((1, out_size), jnp.float32),   # BatchNorm1d bias
    }

    # Two-graph batch: 6 atoms per graph, 8 bonds per graph.
    atom2graph = jnp.array([0] * 6 + [1] * 6, dtype=jnp.int32)
    src0 = jnp.array([0, 1, 1, 2, 2, 3, 4, 5], dtype=jnp.int32)
    dst0 = jnp.array([1, 0, 2, 1, 3, 2, 5, 4], dtype=jnp.int32)
    graph = {
        "atom2graph": atom2graph,
        "bond_src": jnp.concatenate([src0, src0 + 6]),
        "bond_dst": jnp.concatenate([dst0, dst0 + 6]),
    }

    # TODO(synk): num_fc_layers > 1 (hidden BatchNorm+activation inside each MLP)
    # not implemented; default num_fc_layers=1 reduces each MLP to one bias-free
    # Linear, which is what the fused kernels compute.
    out = gatconv_global_bond_forward(feats, graph, params, residual=False)
    out = jax.block_until_ready(out)

    # Pure-JAX reference (train-mode BatchNorm: batch stats, biased variance).
    def reference(feats, graph, params):
        h = feats["atom"] @ params["w_atom"]
        e = feats["bond"] @ params["w_bond"]
        u = feats["global"] @ params["w_global"]
        u_at_e = u[graph["atom2graph"]][graph["bond_src"]]
        s = h[graph["bond_src"]] + h[graph["bond_dst"]] + e + u_at_e
        mean = s.mean(0, keepdims=True)
        var = ((s - mean) ** 2).mean(0, keepdims=True)
        y = (s - mean) * jax.lax.rsqrt(var + 1e-5) * params["gamma"] + params["beta"]
        return jnp.maximum(y, 0.0)

    ref = reference(feats, graph, params)
    assert out.shape == (num_bonds, out_size)
    assert bool(jnp.all(jnp.isfinite(out)))
    assert bool(jnp.allclose(out, ref, atol=5e-2, rtol=5e-2))
    print("KERNEL_OK")
</pallas_src>

<mosaic_0001>
module attributes {stable_mosaic.version = 11 : i64} {
  func.func @_proj_gather_stats_kernel(%arg0: i32, %arg1: memref<16x1xi32, #tpu.memory_space<vmem>>, %arg2: memref<16x1xi32, #tpu.memory_space<vmem>>, %arg3: memref<16x1xi32, #tpu.memory_space<vmem>>, %arg4: memref<16x128xbf16, #tpu.memory_space<vmem>>, %arg5: memref<128x128xbf16, #tpu.memory_space<vmem>>, %arg6: memref<32x128xbf16, #tpu.memory_space<vmem>>, %arg7: memref<16x128xbf16, #tpu.memory_space<vmem>>, %arg8: memref<8x128xf32, #tpu.memory_space<vmem>>, %arg9: memref<8x128xf32, #tpu.memory_space<vmem>>) attributes {dimension_semantics = [#tpu.dimension_semantics<parallel>], iteration_bounds = array<i64: 1>, scalar_prefetch = 0 : i64, scratch_operands = 0 : i64, tpu.core_type = #tpu.core_type<tc>, window_params = [{transform_indices = @transform_0, window_bounds = array<i64: 16, 1>}, {transform_indices = @transform_1, window_bounds = array<i64: 16, 1>}, {transform_indices = @transform_2, window_bounds = array<i64: 16, 1>}, {transform_indices = @transform_3, window_bounds = array<i64: 16, 128>}, {pipeline_mode = #tpu.pipeline_mode<synchronous>, transform_indices = @transform_4, window_bounds = array<i64: 128, 128>}, {pipeline_mode = #tpu.pipeline_mode<synchronous>, transform_indices = @transform_5, window_bounds = array<i64: 32, 128>}, {transform_indices = @transform_6, window_bounds = array<i64: 16, 128>}, {transform_indices = @transform_7, window_bounds = array<i64: 8, 128>}, {transform_indices = @transform_8, window_bounds = array<i64: 8, 128>}]} {
    %c0 = arith.constant 0 : index
    %c0_0 = arith.constant 0 : index
    %0 = vector.load %arg4[%c0, %c0_0] : memref<16x128xbf16, #tpu.memory_space<vmem>>, vector<16x128xbf16>
    %c0_1 = arith.constant 0 : index
    %c0_2 = arith.constant 0 : index
    %1 = vector.load %arg5[%c0_1, %c0_2] : memref<128x128xbf16, #tpu.memory_space<vmem>>, vector<128x128xbf16>
    %cst = arith.constant dense<0.000000e+00> : vector<16x128xf32>
    %2 = tpu.matmul %0, %1, %cst {dimension_numbers = #tpu.dot_dimension_numbers<[1], [0], [0], [1], [0, 0, 1, 1], [], []>} : vector<16x128xbf16>, vector<128x128xbf16>, vector<16x128xf32> -> vector<16x128xf32>
    %3 = tpu.iota {dimensions = array<i32: 1>} : vector<16x32xi32>
    %c0_3 = arith.constant 0 : index
    %c0_4 = arith.constant 0 : index
    %4 = vector.load %arg1[%c0_3, %c0_4] : memref<16x1xi32, #tpu.memory_space<vmem>>, vector<16x1xi32>
    %5 = vector.broadcast %4 : vector<16x1xi32> to vector<16x32xi32>
    %6 = arith.cmpi eq, %3, %5 : vector<16x32xi32>
    %7 = arith.extui %6 : vector<16x32xi1> to vector<16x32xi32>
    %8 = arith.sitofp %7 : vector<16x32xi32> to vector<16x32xf32>
    %c0_5 = arith.constant 0 : index
    %c0_6 = arith.constant 0 : index
    %9 = vector.load %arg2[%c0_5, %c0_6] : memref<16x1xi32, #tpu.memory_space<vmem>>, vector<16x1xi32>
    %10 = vector.broadcast %9 : vector<16x1xi32> to vector<16x32xi32>
    %11 = arith.cmpi eq, %3, %10 : vector<16x32xi32>
    %12 = arith.extui %11 : vector<16x32xi1> to vector<16x32xi32>
    %13 = arith.sitofp %12 : vector<16x32xi32> to vector<16x32xf32>
    %14 = arith.addf %8, %13 : vector<16x32xf32>
    %c0_7 = arith.constant 0 : index
    %c0_8 = arith.constant 0 : index
    %15 = vector.load %arg3[%c0_7, %c0_8] : memref<16x1xi32, #tpu.memory_space<vmem>>, vector<16x1xi32>
    %16 = vector.broadcast %15 : vector<16x1xi32> to vector<16x32xi32>
    %17 = arith.cmpi eq, %3, %16 : vector<16x32xi32>
    %18 = arith.extui %17 : vector<16x32xi1> to vector<16x32xi32>
    %19 = arith.sitofp %18 : vector<16x32xi32> to vector<16x32xf32>
    %20 = arith.addf %14, %19 : vector<16x32xf32>
    %21 = arith.truncf %20 : vector<16x32xf32> to vector<16x32xbf16>
    %c0_9 = arith.constant 0 : index
    %c0_10 = arith.constant 0 : index
    %22 = vector.load %arg6[%c0_9, %c0_10] : memref<32x128xbf16, #tpu.memory_space<vmem>>, vector<32x128xbf16>
    %cst_11 = arith.constant dense<0.000000e+00> : vector<16x128xf32>
    %23 = tpu.matmul %21, %22, %cst_11 {dimension_numbers = #tpu.dot_dimension_numbers<[1], [0], [0], [1], [0, 0, 1, 1], [], []>} : vector<16x32xbf16>, vector<32x128xbf16>, vector<16x128xf32> -> vector<16x128xf32>
    %24 = arith.addf %2, %23 : vector<16x128xf32>
    %25 = arith.truncf %24 : vector<16x128xf32> to vector<16x128xbf16>
    %c0_12 = arith.constant 0 : index
    %c0_13 = arith.constant 0 : index
    %26 = vector.load %arg7[%c0_12, %c0_13] : memref<16x128xbf16, #tpu.memory_space<vmem>>, vector<16x128xbf16>
    tpu.vector_store %arg7[%c0_12, %c0_13], %25 {strides = array<i32>} : memref<16x128xbf16, #tpu.memory_space<vmem>>, vector<16x128xbf16>,
    %cst_14 = arith.constant dense<0.000000e+00> : vector<128xf32>
    %27 = vector.multi_reduction <add>, %24, %cst_14 [0] : vector<16x128xf32> to vector<128xf32>
    %28 = vector.shape_cast %27 : vector<128xf32> to vector<1x128xf32>
    %29 = arith.mulf %24, %24 : vector<16x128xf32>
    %cst_15 = arith.constant dense<0.000000e+00> : vector<128xf32>
    %30 = vector.multi_reduction <add>, %29, %cst_15 [0] : vector<16x128xf32> to vector<128xf32>
    %31 = vector.shape_cast %30 : vector<128xf32> to vector<1x128xf32>
    %32 = vector.shape_cast %28 : vector<1x128xf32> to vector<1x128xf32>
    %33 = vector.broadcast %32 : vector<1x128xf32> to vector<8x128xf32>
    %c0_16 = arith.constant 0 : index
    %c0_17 = arith.constant 0 : index
    %34 = vector.load %arg8[%c0_16, %c0_17] : memref<8x128xf32, #tpu.memory_space<vmem>>, vector<8x128xf32>
    tpu.vector_store %arg8[%c0_16, %c0_17], %33 {strides = array<i32>} : memref<8x128xf32, #tpu.memory_space<vmem>>, vector<8x128xf32>,
    %35 = vector.shape_cast %31 : vector<1x128xf32> to vector<1x128xf32>
    %36 = vector.broadcast %35 : vector<1x128xf32> to vector<8x128xf32>
    %c0_18 = arith.constant 0 : index
    %c0_19 = arith.constant 0 : index
    %37 = vector.load %arg9[%c0_18, %c0_19] : memref<8x128xf32, #tpu.memory_space<vmem>>, vector<8x128xf32>
    tpu.vector_store %arg9[%c0_18, %c0_19], %36 {strides = array<i32>} : memref<8x128xf32, #tpu.memory_space<vmem>>, vector<8x128xf32>,
    return
  }
  func.func @transform_0(%arg0: i32) -> (i32, i32) {
    %c0_i32 = arith.constant 0 : i32
    %c0_i32_0 = arith.constant 0 : i32
    return %arg0, %c0_i32 : i32, i32
  }
  func.func @transform_1(%arg0: i32) -> (i32, i32) {
    %c0_i32 = arith.constant 0 : i32
    %c0_i32_0 = arith.constant 0 : i32
    return %arg0, %c0_i32 : i32, i32
  }
  func.func @transform_2(%arg0: i32) -> (i32, i32) {
    %c0_i32 = arith.constant 0 : i32
    %c0_i32_0 = arith.constant 0 : i32
    return %arg0, %c0_i32 : i32, i32
  }
  func.func @transform_3(%arg0: i32) -> (i32, i32) {
    %c0_i32 = arith.constant 0 : i32
    %c0_i32_0 = arith.constant 0 : i32
    return %arg0, %c0_i32 : i32, i32
  }
  func.func @transform_4(%arg0: i32) -> (i32, i32) {
    %c0_i32 = arith.constant 0 : i32
    %c0_i32_0 = arith.constant 0 : i32
    %c0_i32_1 = arith.constant 0 : i32
    return %c0_i32, %c0_i32_0 : i32, i32
  }
  func.func @transform_5(%arg0: i32) -> (i32, i32) {
    %c0_i32 = arith.constant 0 : i32
    %c0_i32_0 = arith.constant 0 : i32
    %c0_i32_1 = arith.constant 0 : i32
    return %c0_i32, %c0_i32_0 : i32, i32
  }
  func.func @transform_6(%arg0: i32) -> (i32, i32) {
    %c0_i32 = arith.constant 0 : i32
    %c0_i32_0 = arith.constant 0 : i32
    return %arg0, %c0_i32 : i32, i32
  }
  func.func @transform_7(%arg0: i32) -> (i32, i32) {
    %c0_i32 = arith.constant 0 : i32
    %c0_i32_0 = arith.constant 0 : i32
    return %arg0, %c0_i32 : i32, i32
  }
  func.func @transform_8(%arg0: i32) -> (i32, i32) {
    %c0_i32 = arith.constant 0 : i32
    %c0_i32_0 = arith.constant 0 : i32
    return %arg0, %c0_i32 : i32, i32
  }
}

</mosaic_0001>

<llo_original>
// kernel: tpu_custom_call.1
$region0: #{tpu_custom_call.1}
  #allocation0 [shape = 'u32[]', space=smem, size = 0x4, offset = 0x4, fixed_abs, tag = 'smem constant byte address 0x4 - core index']
  #allocation1 [shape = 'u32[72,128]{1,0:T(1,128)}', space=vmem, size = 0x9000, scoped, tag = 'internal scratch']
  %s0 = inlined_call_operand.vmem [shape: s32[16,1], index: 0, kind: input, shape index: {}]
  %s1 = inlined_call_operand.vmem [shape: s32[16,1], index: 1, kind: input, shape index: {}]
  %s2 = inlined_call_operand.vmem [shape: s32[16,1], index: 2, kind: input, shape index: {}]
  %s3 = inlined_call_operand.vmem [shape: bf16[16,128], index: 3, kind: input, shape index: {}]
  %s4 = inlined_call_operand.hbm [shape: bf16[128,128], index: 4, kind: input, shape index: {}]
  %s5 = inlined_call_operand.vmem [shape: bf16[32,128], index: 5, kind: input, shape index: {}]
  %s6 = inlined_call_operand.hbm [shape: bf16[16,128], index: 6, kind: output, shape index: {0}]
  %s7 = inlined_call_operand.hbm [shape: f32[8,128], index: 7, kind: output, shape index: {1}]
  %s8 = inlined_call_operand.hbm [shape: f32[8,128], index: 8, kind: output, shape index: {2}]
  %9 = xla_tuple %s6, %s7, %s8
  %s10 = sld [smem:[#allocation0]]
  $region54: #{tpu_custom_call.1} parent=0
    _
  %s12 = ssub.s32 1, %s10
  %s13 = scalar_select 0, %s12, %s10
  $region1: #{tpu_custom_call.1} parent=0
    #allocation2 [shape = 'u8[32768]{0}', space=vmem, size = 0x8000, scoped, tag = 'input window, operand 4, single buffered']
    #allocation3 [shape = 's32[1]{0}', space=sflag, size = 0x4, scoped, tag = 'scoped memory for tpu_custom_call.1']
    #allocation4 [shape = 's32[1]{0}', space=sflag, size = 0x4, scoped, tag = 'scoped memory for tpu_custom_call.1']
    #allocation5 [shape = 'u8[4096]{0}', space=vmem, size = 0x1000, scoped, tag = 'output window, operand 0, single buffered']
    #allocation6 [shape = 'u8[4096]{0}', space=vmem, size = 0x1000, scoped, tag = 'output window, operand 1, single buffered']
    #allocation7 [shape = 's32[1]{0}', space=sflag, size = 0x4, scoped, tag = 'scoped memory for tpu_custom_call.1']
    #allocation8 [shape = 'u8[4096]{0}', space=vmem, size = 0x1000, scoped, tag = 'output window, operand 2, single buffered']
    %14 = vsyncpa [#allocation3], 0
    %15 = vsyncpa [#allocation4], 0
    %16 = vsyncpa [#allocation7], 0
    // Predicated region
    $region2: #{tpu_custom_call.1} parent=1 // pred_check
      _
    $region3: #{tpu_custom_call.1} parent=1 // pred_check_branch
      %18 = sbr.rel (0) target = $region5
    $region4: #{tpu_custom_call.1} parent=1 // pred_region
      _
    $region5: #{tpu_custom_call.1} parent=1 // pred_fallthru
      _
    // Predicated region
    $region6: #{tpu_custom_call.1} parent=1 // pred_check
      _
    $region7: #{tpu_custom_call.1} parent=1 // pred_check_branch
      %20 = sbr.rel (0) target = $region9
    $region8: #{tpu_custom_call.1} parent=1 // pred_region
      _
    $region9: #{tpu_custom_call.1} parent=1 // pred_fallthru
      _
    // Predicated region
    $region10: #{tpu_custom_call.1} parent=1 // pred_check
      _
    $region11: #{tpu_custom_call.1} parent=1 // pred_check_branch
      %22 = sbr.rel (0) target = $region13
    $region12: #{tpu_custom_call.1} parent=1 // pred_region
      _
    $region13: #{tpu_custom_call.1} parent=1 // pred_fallthru
      _
    // Predicated region
    $region14: #{tpu_custom_call.1} parent=1 // pred_check
      _
    $region15: #{tpu_custom_call.1} parent=1 // pred_check_branch
      %24 = sbr.rel (0) target = $region17
    $region16: #{tpu_custom_call.1} parent=1 // pred_region
      _
    $region17: #{tpu_custom_call.1} parent=1 // pred_fallthru
      _
    // Predicated region
    $region18: #{tpu_custom_call.1} parent=1 // pred_check
      _
    $region19: #{tpu_custom_call.1} parent=1 // pred_check_branch
      %26 = sbr.rel (0) target = $region21
    $region20: #{tpu_custom_call.1} parent=1 // pred_region
      %28 = vsyncadd [#allocation3], 0
      %s29 = sshll.u32 %s4, 4
      %s30 = int_to_ptr.hbm [resolvable:$true] %s29
      %s31 = sshll.u32 [#allocation2], 4
      %s32 = int_to_ptr.vmem [resolvable:$true] %s31
      %37 = dma.hbm_to_vmem [thread:$0]  %s30, 1024, %s32, [#allocation3], 64, 64, 4
    $region21: #{tpu_custom_call.1} parent=1 // pred_fallthru
      _
    // Predicated region
    $region22: #{tpu_custom_call.1} parent=1 // pred_check
      _
    $region23: #{tpu_custom_call.1} parent=1 // pred_check_branch
      %39 = sbr.rel (0) target = $region25
    $region24: #{tpu_custom_call.1} parent=1 // pred_region
      _
    $region25: #{tpu_custom_call.1} parent=1 // pred_fallthru
      _
    // Predicated region
    $region26: #{tpu_custom_call.1} parent=1 // pred_check
      _
    $region27: #{tpu_custom_call.1} parent=1 // pred_check_branch
      %41 = sbr.rel (0) target = $region29
    $region28: #{tpu_custom_call.1} parent=1 // pred_region
      %43 = dma.done [#allocation3], 1024
    $region29: #{tpu_custom_call.1} parent=1 // pred_fallthru
      _
    %v45 = vld [vmem:[%s3] sm:$0xf]
    %v46 = vld [vmem:[%s3 + $0x4] sm:$0xf]
    %v47 = vld [vmem:[#allocation2] sm:$0xf]
    %v48 = vld [vmem:[#allocation2 + $0x4] sm:$0xf]
    %v49 = vld [vmem:[#allocation2 + $0x8] sm:$0xf]
    %v50 = vld [vmem:[#allocation2 + $0xc] sm:$0xf]
    %v51 = vld [vmem:[#allocation2 + $0x10] sm:$0xf]
    %v52 = vld [vmem:[#allocation2 + $0x14] sm:$0xf]
    %v53 = vld [vmem:[#allocation2 + $0x18] sm:$0xf]
    %v54 = vld [vmem:[#allocation2 + $0x1c] sm:$0xf]
    %v55 = vld [vmem:[#allocation2 + $0x20] sm:$0xf]
    %v56 = vld [vmem:[#allocation2 + $0x24] sm:$0xf]
    %v57 = vld [vmem:[#allocation2 + $0x28] sm:$0xf]
    %v58 = vld [vmem:[#allocation2 + $0x2c] sm:$0xf]
    %v59 = vld [vmem:[#allocation2 + $0x30] sm:$0xf]
    %v60 = vld [vmem:[#allocation2 + $0x34] sm:$0xf]
    %v61 = vld [vmem:[#allocation2 + $0x38] sm:$0xf]
    %v62 = vld [vmem:[#allocation2 + $0x3c] sm:$0xf]
    %v63 = vlaneseq
    %v64 = vand.u32 %v63, 127
    %v65 = vld [vmem:[%s0] sm:$0xff]
    %v66 = vld [vmem:[%s0 + $0x8] sm:$0xff]
    %67 = vset.pattern.permute.xlu0 0
    %68 = vperm.xlu0 %67, %v65
    %v69 = vpop.permute.xlu0 %68
    %70 = vset.pattern.permute.xlu0 0
    %71 = vperm.xlu0 %70, %v66
    %v72 = vpop.permute.xlu0 %71
    %vm73 = vcmp.eq.s32.totalorder %v64, %v69
    %vm74 = vcmp.eq.s32.totalorder %v64, %v72
    %v75 = vsel %vm73, 1, 0
    %v76 = vsel %vm74, 1, 0
    %v77 = vcvt.s32.f32 %v75
    %v78 = vcvt.s32.f32 %v76
    %v79 = vld [vmem:[%s1] sm:$0xff]
    %v80 = vld [vmem:[%s1 + $0x8] sm:$0xff]
    %81 = vset.pattern.permute.xlu0 0
    %82 = vperm.xlu0 %81, %v79
    %v83 = vpop.permute.xlu0 %82
    %84 = vset.pattern.permute.xlu0 0
    %85 = vperm.xlu0 %84, %v80
    %v86 = vpop.permute.xlu0 %85
    %vm87 = vcmp.eq.s32.totalorder %v64, %v83
    %vm88 = vcmp.eq.s32.totalorder %v64, %v86
    %v89 = vsel %vm87, 1, 0
    %v90 = vsel %vm88, 1, 0
    %v91 = vcvt.s32.f32 %v89
    %v92 = vcvt.s32.f32 %v90
    %v93 = vadd.f32 %v77, %v91
    %v94 = vadd.f32 %v78, %v92
    %v95 = vld [vmem:[%s2] sm:$0xff]
    %v96 = vld [vmem:[%s2 + $0x8] sm:$0xff]
    %97 = vset.pattern.permute.xlu0 0
    %98 = vperm.xlu0 %97, %v95
    %v99 = vpop.permute.xlu0 %98
    %100 = vset.pattern.permute.xlu0 0
    %101 = vperm.xlu0 %100, %v96
    %v102 = vpop.permute.xlu0 %101
    %vm103 = vcmp.eq.s32.totalorder %v64, %v99
    %vm104 = vcmp.eq.s32.totalorder %v64, %v102
    %v105 = vsel %vm103, 1, 0
    %v106 = vsel %vm104, 1, 0
    %v107 = vcvt.s32.f32 %v105
    %v108 = vcvt.s32.f32 %v106
    %v109 = vadd.f32 %v93, %v107
    %v110 = vadd.f32 %v94, %v108
    %v111 = vpack.c.bf16 %v110, %v109
    %v112 = vld [vmem:[%s5] sm:$0xf]
    %v113 = vld [vmem:[%s5 + $0x4] sm:$0xf]
    %v114 = vld [vmem:[%s5 + $0x8] sm:$0xf]
    %v115 = vld [vmem:[%s5 + $0xc] sm:$0xf]
    %v120 = vunpack.c.l.b16 %v112
    %v121 = vunpack.c.l.b16 %v113
    %v122 = vunpack.c.l.b16 %v114
    %v123 = vunpack.c.l.b16 %v115
    %v124 = vpack.c.b16 %v121, %v120
    %v125 = vpack.c.b16 %v123, %v122
    %vm128 = vcmask 261120
    %v130 = vsel %vm128, %v111, 0
    %132 = vmatpush.bf16.msra.mxu0 0
    %133 = vmatpush.bf16.msra.mxu0 0
    %134 = vmatpush.bf16.msra.mxu0 0
    %135 = vmatpush.bf16.msra.mxu0 0
    %136 = vmatpush.bf16.msra.mxu0 0
    %137 = vmatpush.bf16.msra.mxu0 0
    %138 = vmatpush.bf16.msra.mxu0 %v125
    %139 = vmatpush.bf16.msra.mxu0 %v124
    %140 = vmatmul.bf16.gmra.mxu0 %v130
    %v141 = vpop.f32.mrf.mxu0
    %v142 = vadd.f32 0.0, %v141
    %v143 = vpop.f32.mrf.mxu0
    %v144 = vadd.f32 0.0, %v143
    %145 = vdwg.mxu0
    %v148 = vunpack.c.l.b16 %v45
    %v149 = vunpack.c.l.b16 %v46
    %v150 = vpack.c.b16 %v149, %v148
    %v168 = vunpack.c.l.b16 %v47
    %v169 = vunpack.c.l.b16 %v48
    %v170 = vunpack.c.l.b16 %v49
    %v171 = vunpack.c.l.b16 %v50
    %v172 = vunpack.c.l.b16 %v51
    %v173 = vunpack.c.l.b16 %v52
    %v174 = vunpack.c.l.b16 %v53
    %v175 = vunpack.c.l.b16 %v54
    %v176 = vunpack.c.l.b16 %v55
    %v177 = vunpack.c.l.b16 %v56
    %v178 = vunpack.c.l.b16 %v57
    %v179 = vunpack.c.l.b16 %v58
    %v180 = vunpack.c.l.b16 %v59
    %v181 = vunpack.c.l.b16 %v60
    %v182 = vunpack.c.l.b16 %v61
    %v183 = vunpack.c.l.b16 %v62
    %v184 = vpack.c.b16 %v169, %v168
    %v185 = vpack.c.b16 %v171, %v170
    %v186 = vpack.c.b16 %v173, %v172
    %v187 = vpack.c.b16 %v175, %v174
    %v188 = vpack.c.b16 %v177, %v176
    %v189 = vpack.c.b16 %v179, %v178
    %v190 = vpack.c.b16 %v181, %v180
    %v191 = vpack.c.b16 %v183, %v182
    %200 = vmatpush.bf16.msra.mxu0 %v191
    %201 = vmatpush.bf16.msra.mxu0 %v190
    %202 = vmatpush.bf16.msra.mxu0 %v189
    %203 = vmatpush.bf16.msra.mxu0 %v188
    %204 = vmatpush.bf16.msra.mxu0 %v187
    %205 = vmatpush.bf16.msra.mxu0 %v186
    %206 = vmatpush.bf16.msra.mxu0 %v185
    %207 = vmatpush.bf16.msra.mxu0 %v184
    %208 = vmatmul.bf16.gmra.mxu0 %v150
    %v209 = vpop.f32.mrf.mxu0
    %v210 = vadd.f32 %v142, %v209
    %v211 = vpop.f32.mrf.mxu0
    %v212 = vadd.f32 %v144, %v211
    %213 = vdwg.mxu0
    %v214 = vpack.c.bf16 %v210, %v210
    %v215 = vpack.c.bf16 %v212, %v212
    %216 = vst [vmem:[#allocation5] sm:$0xf] %v214
    %217 = vst [vmem:[#allocation5 + $0x4] sm:$0xf] %v215
    %v218 = vadd.f32 %v210, %v212
    %v219 = vrot.slane %v218, 4
    %v220 = vadd.f32 %v218, %v219
    %v221 = vrot.slane %v220, 2
    %v222 = vadd.f32 %v220, %v221
    %v223 = vrot.slane %v222, 1
    %v224 = vadd.f32 %v222, %v223
    %v225 = vmul.f32 %v210, %v210
    %v226 = vmul.f32 %v212, %v212
    %v227 = vadd.f32 %v225, %v226
    %v228 = vrot.slane %v227, 4
    %v229 = vadd.f32 %v227, %v228
    %v230 = vrot.slane %v229, 2
    %v231 = vadd.f32 %v229, %v230
    %v232 = vrot.slane %v231, 1
    %v233 = vadd.f32 %v231, %v232
    %234 = vst [vmem:[#allocation6] sm:$0xff] %v224
    %235 = vst [vmem:[#allocation8] sm:$0xff] %v233
    // Predicated region
    $region30: #{tpu_custom_call.1} parent=1 // pred_check
      _
    $region31: #{tpu_custom_call.1} parent=1 // pred_check_branch
      %237 = sbr.rel (0) target = $region33
    $region32: #{tpu_custom_call.1} parent=1 // pred_region
      %239 = vsyncadd [#allocation4], 0
      %s240 = sshll.u32 [#allocation5], 4
      %s241 = int_to_ptr.vmem [resolvable:$true] %s240
      %s242 = sshll.u32 %s6, 4
      %s243 = int_to_ptr.hbm [resolvable:$true] %s242
      %248 = dma.vmem_to_hbm [thread:$0]  %s241, 128, %s243, [#allocation4], 64, 64, 4
    $region33: #{tpu_custom_call.1} parent=1 // pred_fallthru
      _
    // Predicated region
    $region34: #{tpu_custom_call.1} parent=1 // pred_check
      _
    $region35: #{tpu_custom_call.1} parent=1 // pred_check_branch
      %250 = sbr.rel (0) target = $region37
    $region36: #{tpu_custom_call.1} parent=1 // pred_region
      %252 = vsyncadd [#allocation7], 0
      %s254 = sshll.u32 [#allocation6], 4
      %s255 = int_to_ptr.vmem [resolvable:$true] %s254
      %s256 = sshll.u32 %s7, 4
      %s257 = int_to_ptr.hbm [resolvable:$true] %s256
      %259 = dma.vmem_to_hbm [thread:$0]  %s255, 128, %s257, [#allocation7]
    $region37: #{tpu_custom_call.1} parent=1 // pred_fallthru
      _
    // Predicated region
    $region38: #{tpu_custom_call.1} parent=1 // pred_check
      _
    $region39: #{tpu_custom_call.1} parent=1 // pred_check_branch
      %261 = sbr.rel (0) target = $region41
    $region40: #{tpu_custom_call.1} parent=1 // pred_region
      %263 = vsyncadd [#allocation7], 0
      %s265 = sshll.u32 [#allocation8], 4
      %s266 = int_to_ptr.vmem [resolvable:$true] %s265
      %s267 = sshll.u32 %s8, 4
      %s268 = int_to_ptr.hbm [resolvable:$true] %s267
      %270 = dma.vmem_to_hbm [thread:$0]  %s266, 128, %s268, [#allocation7]
    $region41: #{tpu_custom_call.1} parent=1 // pred_fallthru
      _
    // Predicated region
    $region42: #{tpu_custom_call.1} parent=1 // pred_check
      _
    $region43: #{tpu_custom_call.1} parent=1 // pred_check_branch
      %272 = sbr.rel (0) target = $region45
    $region44: #{tpu_custom_call.1} parent=1 // pred_region
      %274 = dma.done [#allocation4], 128
    $region45: #{tpu_custom_call.1} parent=1 // pred_fallthru
      _
    // Predicated region
    $region46: #{tpu_custom_call.1} parent=1 // pred_check
      _
    $region47: #{tpu_custom_call.1} parent=1 // pred_check_branch
      %276 = sbr.rel (0) target = $region49
    $region48: #{tpu_custom_call.1} parent=1 // pred_region
      %278 = dma.done [#allocation7], 128
    $region49: #{tpu_custom_call.1} parent=1 // pred_fallthru
      _
    // Predicated region
    $region50: #{tpu_custom_call.1} parent=1 // pred_check
      _
    $region51: #{tpu_custom_call.1} parent=1 // pred_check_branch
      %280 = sbr.rel (0) target = $region53
    $region52: #{tpu_custom_call.1} parent=1 // pred_region
      %282 = dma.done [#allocation7], 128
    $region53: #{tpu_custom_call.1} parent=1 // pred_fallthru
      _
    %283 = vsyncpa [#allocation3], 1
    %284 = vsyncpa [#allocation4], 1
    %285 = vsyncpa [#allocation7], 1

</llo_original>
